<compile_context>
chip_gen: v5e
topology: v5e:2x2
jax: 0.10.0
libtpu: 0.0.40
codegen_flags: <defaults>
</compile_context>

<pallas_src>
import functools

import jax
import jax.numpy as jnp
from jax.experimental import pallas as pl
from jax.experimental.pallas import tpu as pltpu

_LEAKY_SLOPE = 0.2     # relu_slope used everywhere in PhaseNet
_TILE_M = 512          # lane-tile: 512*K*4B*2buf stays well under v7x VMEM
_VMEM_LIMIT = 48 * 1024 * 1024


def _round_up(n, m):
    return ((n + m - 1) // m) * m


# ----------------------------------------------------------------------------
# Pallas kernels
# ----------------------------------------------------------------------------
def _mm_act_kernel(x_ref, w_ref, b_ref, o_ref, *, act, slope):
    """(Cout,K) @ (K,TM) + bias, fused activation.  Lane axis = spatial."""
    y = jnp.dot(w_ref[...], x_ref[...], preferred_element_type=jnp.float32)
    y = y + b_ref[...]
    if act == "leaky":
        y = jnp.where(y > 0, y, slope * y)
    elif act == "sigmoid":
        y = 1.0 / (1.0 + jnp.exp(-y))
    o_ref[...] = y


def _phase_kernel(amp_ref, pha_ref, w1_ref, b1_ref, w2_ref, b2_ref,
                  re_ref, im_ref, *, slope):
    """Fused FFT-phase branch: conv1x1 -> LeakyReLU -> conv1x1 on the phase,
    then recompose amp*exp(i*phase') as (re, im)."""
    p = jnp.dot(w1_ref[...], pha_ref[...], preferred_element_type=jnp.float32)
    p = p + b1_ref[...]
    p = jnp.where(p > 0, p, slope * p)
    p = jnp.dot(w2_ref[...], p, preferred_element_type=jnp.float32) + b2_ref[...]
    amp = amp_ref[...]
    re_ref[...] = amp * jnp.cos(p)
    im_ref[...] = amp * jnp.sin(p)


# ----------------------------------------------------------------------------
# pallas_call wrappers (channels-first flattened layout)
# ----------------------------------------------------------------------------
def _pick_tile(m):
    return _TILE_M if m > _TILE_M else _round_up(m, 128)


def _matmul_bias_act(cols, w, b, act="none", slope=_LEAKY_SLOPE):
    """cols: (K, M) activations; w: (Cout, K); b: (Cout,).  Returns (Cout, M)."""
    k, m = cols.shape
    cout = w.shape[0]
    tm = _pick_tile(m)
    mp = _round_up(m, tm)
    if mp != m:
        cols = jnp.pad(cols, ((0, 0), (0, mp - m)))
    cost = pl.CostEstimate(
        flops=2 * k * cout * mp,
        transcendentals=(cout * mp if act == "sigmoid" else 0),
        bytes_accessed=4 * (k * mp + cout * k + cout * mp + cout))
    out = pl.pallas_call(
        functools.partial(_mm_act_kernel, act=act, slope=slope),
        out_shape=jax.ShapeDtypeStruct((cout, mp), jnp.float32),
        grid=(mp // tm,),
        in_specs=[
            pl.BlockSpec((k, tm), lambda i: (0, i)),      # streamed activations
            pl.BlockSpec((cout, k), lambda i: (0, 0)),    # resident weights
            pl.BlockSpec((cout, 1), lambda i: (0, 0)),    # resident bias
        ],
        out_specs=pl.BlockSpec((cout, tm), lambda i: (0, i)),
        compiler_params=pltpu.CompilerParams(
            dimension_semantics=("parallel",),
            vmem_limit_bytes=_VMEM_LIMIT),
        cost_estimate=cost,
    )(cols, w, b.reshape(cout, 1))
    return out[:, :m]


def _phase_branch_cm(amp_cm, pha_cm, w1, b1, w2, b2, slope=_LEAKY_SLOPE):
    """amp/pha: (C, M) over the frequency grid.  Returns (re, im) each (C, M)."""
    c, m = amp_cm.shape
    tm = _pick_tile(m)
    mp = _round_up(m, tm)
    if mp != m:
        pad = ((0, 0), (0, mp - m))
        amp_cm = jnp.pad(amp_cm, pad)
        pha_cm = jnp.pad(pha_cm, pad)
    cost = pl.CostEstimate(
        flops=4 * c * c * mp,
        transcendentals=2 * c * mp,
        bytes_accessed=4 * (4 * c * mp + 2 * c * c + 2 * c))
    re, im = pl.pallas_call(
        functools.partial(_phase_kernel, slope=slope),
        out_shape=(jax.ShapeDtypeStruct((c, mp), jnp.float32),
                   jax.ShapeDtypeStruct((c, mp), jnp.float32)),
        grid=(mp // tm,),
        in_specs=[
            pl.BlockSpec((c, tm), lambda i: (0, i)),
            pl.BlockSpec((c, tm), lambda i: (0, i)),
            pl.BlockSpec((c, c), lambda i: (0, 0)),
            pl.BlockSpec((c, 1), lambda i: (0, 0)),
            pl.BlockSpec((c, c), lambda i: (0, 0)),
            pl.BlockSpec((c, 1), lambda i: (0, 0)),
        ],
        out_specs=(pl.BlockSpec((c, tm), lambda i: (0, i)),
                   pl.BlockSpec((c, tm), lambda i: (0, i))),
        compiler_params=pltpu.CompilerParams(
            dimension_semantics=("parallel",),
            vmem_limit_bytes=_VMEM_LIMIT),
        cost_estimate=cost,
    )(amp_cm, pha_cm, w1, b1.reshape(c, 1), w2, b2.reshape(c, 1))
    return re[:, :m], im[:, :m]


# ----------------------------------------------------------------------------
# Layout helpers + conv primitives (wrapper = data movement only)
# ----------------------------------------------------------------------------
def _to_cm(x):                      # (N,C,H,W) -> (C, N*H*W)
    n, c, h, w = x.shape
    return jnp.transpose(x, (1, 0, 2, 3)).reshape(c, n * h * w)


def _from_cm(y, n, h, w):           # (C, N*H*W) -> (N,C,H,W)
    c = y.shape[0]
    return jnp.transpose(y.reshape(c, n, h, w), (1, 0, 2, 3))


def conv1x1(x, w, b, act="none"):
    n, c, h, wd = x.shape
    cout = w.shape[0]
    y = _matmul_bias_act(_to_cm(x), w.reshape(cout, c), b, act)
    return _from_cm(y, n, h, wd)


def conv3x3(x, w, b, act="none"):
    # TODO(synk): replace wrapper im2col (9x read amplification) with an
    # in-kernel halo tile + 9-tap accumulation for large images.
    n, c, h, wd = x.shape
    cout = w.shape[0]
    xp = jnp.pad(x, ((0, 0), (0, 0), (1, 1), (1, 1)))
    taps = [xp[:, :, di:di + h, dj:dj + wd] for di in range(3) for dj in range(3)]
    cols = jnp.stack(taps, axis=2)                             # (N,C,9,H,W)
    cols = jnp.transpose(cols, (1, 2, 0, 3, 4)).reshape(c * 9, n * h * wd)
    y = _matmul_bias_act(cols, w.reshape(cout, c * 9), b, act)
    return _from_cm(y, n, h, wd)


def conv4x4_s2(x, w, b):
    # Conv2d(k=4, stride=2, padding=1) via strided im2col.
    n, c, h, wd = x.shape
    cout = w.shape[0]
    h2, w2 = h // 2, wd // 2
    xp = jnp.pad(x, ((0, 0), (0, 0), (1, 1), (1, 1)))
    taps = [xp[:, :, di:di + 2 * h2 - 1:2, dj:dj + 2 * w2 - 1:2]
            for di in range(4) for dj in range(4)]
    cols = jnp.stack(taps, axis=2)                             # (N,C,16,H2,W2)
    cols = jnp.transpose(cols, (1, 2, 0, 3, 4)).reshape(c * 16, n * h2 * w2)
    y = _matmul_bias_act(cols, w.reshape(cout, c * 16), b, "none")
    return _from_cm(y, n, h2, w2)


def conv_transpose2x2(x, wt, b):
    # torch ConvTranspose2d(cin, cout, 2, stride=2): wt (cin, cout, 2, 2).
    # Lowered to one matmul to cout*4 channels + depth-to-space rearrange.
    n, c, h, wd = x.shape
    cout = wt.shape[1]
    w_flat = jnp.transpose(wt, (1, 2, 3, 0)).reshape(cout * 4, c)  # rows (co,dy,dx)
    y = _matmul_bias_act(_to_cm(x), w_flat, jnp.repeat(b, 4), "none")
    y = y.reshape(cout, 2, 2, n, h, wd)
    return jnp.transpose(y, (3, 0, 4, 1, 5, 2)).reshape(n, cout, 2 * h, 2 * wd)


def pixel_shuffle2(x):
    n, c4, h, w = x.shape
    c = c4 // 4
    x = x.reshape(n, c, 2, 2, h, w)
    return jnp.transpose(x, (0, 1, 4, 2, 5, 3)).reshape(n, c, 2 * h, 2 * w)


def instance_norm(x, gamma, beta, eps=1e-5):
    # TODO(synk): InstanceNorm spatial reduction kept in plain JAX.
    mean = jnp.mean(x, axis=(2, 3), keepdims=True)
    var = jnp.var(x, axis=(2, 3), keepdims=True)
    xn = (x - mean) / jnp.sqrt(var + eps)
    return xn * gamma.reshape(1, -1, 1, 1) + beta.reshape(1, -1, 1, 1)


# ----------------------------------------------------------------------------
# PhaseNet building blocks (faithful to the PyTorch forward)
# ----------------------------------------------------------------------------
def hin_res_block(x, p):
    resi = conv3x3(x, p["w1"], p["b1"], act="leaky")
    c = resi.shape[1]
    o1, o2 = resi[:, :c // 2], resi[:, c // 2:]
    o1 = instance_norm(o1, p["gamma"], p["beta"])
    resi = jnp.concatenate([o1, o2], axis=1)
    resi = conv3x3(resi, p["w2"], p["b2"], act="leaky")
    return x + resi


def fft_phase_branch(x_res, p):
    n, c, h, w = x_res.shape
    x_fft = jnp.fft.fft2(x_res, axes=(-2, -1))
    amp = jnp.abs(x_fft)
    # TODO(synk): move angle (atan2) into the Pallas kernel once a Mosaic
    # atan2 lowering is confirmed; computed with XLA for now.
    pha = jnp.angle(x_fft)
    re, im = _phase_branch_cm(_to_cm(amp), _to_cm(pha),
                              p["fw1"].reshape(c, c), p["fb1"],
                              p["fw2"].reshape(c, c), p["fb2"])
    comp = jax.lax.complex(_from_cm(re, n, h, w), _from_cm(im, n, h, w))
    return jnp.real(jnp.fft.ifft2(comp, axes=(-2, -1)))


def fft_conv_block_phase(x, p, downsample):
    out = conv3x3(x, p["w1"], p["b1"], act="leaky")
    out = conv3x3(out, p["w2"], p["b2"], act="leaky")
    x_res = conv1x1(x, p["wid"], p["bid"])
    out = out + x_res + fft_phase_branch(x_res, p)
    if downsample:
        return conv4x4_s2(out, p["wd"], p["bd"]), out
    return out


def fft_conv_block_plain(x, p):
    out = conv3x3(x, p["w1"], p["b1"], act="leaky")
    out = conv3x3(out, p["w2"], p["b2"], act="leaky")
    return out + conv1x1(x, p["wid"], p["bid"])


def sam_block(x, x_img, p):
    x1 = conv3x3(x, p["w1"], p["b1"])
    img = conv3x3(x, p["w2"], p["b2"]) + x_img
    x2 = conv3x3(img, p["w3"], p["b3"], act="sigmoid")
    return x1 * x2 + x, img


def phasenet_forward(params, x, demo):
    # conv_01
    x1 = conv3x3(x, params["c0_w"], params["c0_b"])
    x1 = hin_res_block(x1, params["hin_a"])
    x1 = hin_res_block(x1, params["hin_b"])
    # encoder
    encs, decs = [], []
    depth = len(params["down"])
    for i, bp in enumerate(params["down"]):
        if i + 1 < depth:
            x1, x1_up = fft_conv_block_phase(x1, bp, downsample=True)
            encs.append(x1_up)
        else:
            x1 = fft_conv_block_phase(x1, bp, downsample=False)
    # decoder
    for i, up_p in enumerate(params["up"]):
        bridge = hin_res_block(encs[-i - 1], params["skip"][i])
        up = conv_transpose2x2(x1, up_p["tw"], up_p["tb"])
        x1 = fft_conv_block_plain(jnp.concatenate([up, bridge], axis=1),
                                  up_p["blk"])
        decs.append(x1)
    # demosaic + SAM
    x1 = pixel_shuffle2(conv3x3(x1, params["dm_w"], params["dm_b"]))
    sam_feature, out_1 = sam_block(x1, demo, params["sam"])
    # final rFFT phase swap
    out_1_fft = jnp.fft.rfft2(out_1, axes=(-2, -1))
    out_1_phase = jnp.angle(out_1_fft)
    image_fft = jnp.fft.rfft2(demo, axes=(-2, -1))
    image_amp = jnp.abs(image_fft)
    image_inverse = jnp.fft.irfft2(image_amp * jnp.exp(1j * out_1_phase),
                                   axes=(-2, -1))
    return out_1_phase, sam_feature, image_inverse, out_1, encs, decs


# ----------------------------------------------------------------------------
# Deterministic synthetic parameters (shapes per PhaseNet.__init__)
# ----------------------------------------------------------------------------
def init_phasenet_params(key, in_chn=4, wf=16, depth=4):
    keys = iter(jax.random.split(key, 256))

    def w_(shape):
        return 0.1 * jax.random.normal(next(keys), shape, jnp.float32)

    def conv_p(cout, cin, k, bias=True):
        w = w_((cout, cin, k, k))
        b = w_((cout,)) if bias else jnp.zeros((cout,), jnp.float32)
        return w, b

    def hin_p(c):
        w1, b1 = conv_p(c, c, 3)
        w2, b2 = conv_p(c, c, 3)
        return {"w1": w1, "b1": b1, "w2": w2, "b2": b2,
                "gamma": 1.0 + 0.1 * jax.random.normal(next(keys), (c // 2,), jnp.float32),
                "beta": 0.1 * jax.random.normal(next(keys), (c // 2,), jnp.float32)}

    params = {}
    params["c0_w"], params["c0_b"] = conv_p(wf, in_chn, 3)
    params["hin_a"] = hin_p(wf)
    params["hin_b"] = hin_p(wf)

    down, prev = [], wf
    for i in range(depth):
        out = (2 ** i) * wf
        blk = {}
        blk["w1"], blk["b1"] = conv_p(out, prev, 3)
        blk["w2"], blk["b2"] = conv_p(out, out, 3)
        blk["wid"], blk["bid"] = conv_p(out, prev, 1)
        blk["fw1"], blk["fb1"] = conv_p(out, out, 1)
        blk["fw2"], blk["fb2"] = conv_p(out, out, 1)
        if i + 1 < depth:
            blk["wd"], blk["bd"] = conv_p(out, out, 4, bias=False)  # conv_down, no bias
        down.append(blk)
        prev = out
    params["down"] = down

    up, skip = [], []
    for i in reversed(range(depth - 1)):
        out = (2 ** i) * wf
        u = {"tw": w_((prev, out, 2, 2)), "tb": w_((out,))}
        blk = {}
        blk["w1"], blk["b1"] = conv_p(out, prev, 3)
        blk["w2"], blk["b2"] = conv_p(out, out, 3)
        blk["wid"], blk["bid"] = conv_p(out, prev, 1)
        u["blk"] = blk
        up.append(u)
        skip.append(hin_p(out))
        prev = out
    params["up"] = up
    params["skip"] = skip

    params["dm_w"], params["dm_b"] = conv_p(4 * wf, wf, 3)
    params["sam"] = {}
    params["sam"]["w1"], params["sam"]["b1"] = conv_p(wf, wf, 3)
    params["sam"]["w2"], params["sam"]["b2"] = conv_p(3, wf, 3)
    params["sam"]["w3"], params["sam"]["b3"] = conv_p(wf, 3, 3)
    return params


# ----------------------------------------------------------------------------
# Unit checks: every Pallas primitive vs a pure-JAX / lax reference
# ----------------------------------------------------------------------------
def _leaky_ref(v):
    return jnp.where(v > 0, v, _LEAKY_SLOPE * v)


def _check_close(a, b, tag, tol=2e-4):
    err = float(jnp.max(jnp.abs(a - b)))
    scale = float(jnp.max(jnp.abs(b))) + 1.0
    if err > tol * scale:
        raise AssertionError(f"{tag}: max abs err {err} (scale {scale})")


def _unit_checks(key):
    ks = jax.random.split(key, 10)
    n, cin, cout, h, w = 2, 8, 16, 16, 16
    x = jax.random.normal(ks[0], (n, cin, h, w), jnp.float32)

    w3 = 0.1 * jax.random.normal(ks[1], (cout, cin, 3, 3), jnp.float32)
    b3 = 0.1 * jax.random.normal(ks[2], (cout,), jnp.float32)
    ref = jax.lax.conv_general_dilated(
        x, w3, (1, 1), [(1, 1), (1, 1)],
        dimension_numbers=("NCHW", "OIHW", "NCHW")) + b3.reshape(1, -1, 1, 1)
    _check_close(conv3x3(x, w3, b3), ref, "conv3x3")
    _check_close(conv3x3(x, w3, b3, act="leaky"), _leaky_ref(ref), "conv3x3+leaky")
    _check_close(conv3x3(x, w3, b3, act="sigmoid"), jax.nn.sigmoid(ref), "conv3x3+sigmoid")

    w1 = 0.1 * jax.random.normal(ks[3], (cout, cin, 1, 1), jnp.float32)
    b1 = 0.1 * jax.random.normal(ks[4], (cout,), jnp.float32)
    ref1 = jax.lax.conv_general_dilated(
        x, w1, (1, 1), [(0, 0), (0, 0)],
        dimension_numbers=("NCHW", "OIHW", "NCHW")) + b1.reshape(1, -1, 1, 1)
    _check_close(conv1x1(x, w1, b1), ref1, "conv1x1")

    w4 = 0.1 * jax.random.normal(ks[5], (cout, cin, 4, 4), jnp.float32)
    ref4 = jax.lax.conv_general_dilated(
        x, w4, (2, 2), [(1, 1), (1, 1)],
        dimension_numbers=("NCHW", "OIHW", "NCHW"))
    _check_close(conv4x4_s2(x, w4, jnp.zeros((cout,), jnp.float32)), ref4, "conv4x4s2")

    wt = 0.1 * jax.random.normal(ks[6], (cin, cout, 2, 2), jnp.float32)
    bt = 0.1 * jax.random.normal(ks[7], (cout,), jnp.float32)
    reft = (jnp.einsum("nchw,cokl->nohkwl", x, wt).reshape(n, cout, 2 * h, 2 * w)
            + bt.reshape(1, -1, 1, 1))
    _check_close(conv_transpose2x2(x, wt, bt), reft, "conv_transpose2x2")

    # fused FFT-phase kernel vs pure-JAX math on identical inputs
    c = 16
    fr = jax.random.normal(ks[8], (n, c, h, w), jnp.float32)
    fi = jax.random.normal(ks[9], (n, c, h, w), jnp.float32)
    fw1 = 0.1 * jax.random.normal(ks[1], (c, c), jnp.float32)
    fb1 = 0.1 * jax.random.normal(ks[2], (c,), jnp.float32)
    fw2 = 0.1 * jax.random.normal(ks[3], (c, c), jnp.float32)
    fb2 = 0.1 * jax.random.normal(ks[4], (c,), jnp.float32)
    amp = jnp.sqrt(fr * fr + fi * fi)
    pha = jnp.arctan2(fi, fr)
    re, im = _phase_branch_cm(_to_cm(amp), _to_cm(pha), fw1, fb1, fw2, fb2)
    re, im = _from_cm(re, n, h, w), _from_cm(im, n, h, w)
    p = jnp.einsum("oc,nchw->nohw", fw1, pha) + fb1.reshape(1, -1, 1, 1)
    p = _leaky_ref(p)
    p = jnp.einsum("oc,nchw->nohw", fw2, p) + fb2.reshape(1, -1, 1, 1)
    _check_close(re, amp * jnp.cos(p), "phase_branch.re")
    _check_close(im, amp * jnp.sin(p), "phase_branch.im")


# ----------------------------------------------------------------------------
if __name__ == "__main__":
    key = jax.random.PRNGKey(0)
    k_par, k_x, k_demo, k_u = jax.random.split(key, 4)

    # 1) correctness of every Pallas primitive against lax/JAX references
    _unit_checks(k_u)

    # 2) full PhaseNet forward (small shapes: N=1, in_chn=4, wf=16, depth=4,
    #    16x16 RAW input, 3x32x32 demosaicked image)
    N, IN_CHN, WF, DEPTH, H, W = 1, 4, 16, 4, 16, 16
    params = init_phasenet_params(k_par, IN_CHN, WF, DEPTH)
    x = jax.random.normal(k_x, (N, IN_CHN, H, W), jnp.float32)
    demo = jax.random.normal(k_demo, (N, 3, 2 * H, 2 * W), jnp.float32)

    fwd = jax.jit(phasenet_forward)
    outs = jax.block_until_ready(fwd(params, x, demo))
    out_1_phase, sam_feature, image_inverse, out_1, encs, decs = outs

    assert out_1_phase.shape == (N, 3, 2 * H, W + 1)
    assert sam_feature.shape == (N, WF, 2 * H, 2 * W)
    assert image_inverse.shape == (N, 3, 2 * H, 2 * W)
    assert out_1.shape == (N, 3, 2 * H, 2 * W)
    for a in (out_1_phase, sam_feature, image_inverse, out_1):
        assert bool(jnp.all(jnp.isfinite(a)))

    print("KERNEL_OK")
</pallas_src>

<mosaic_0001>
module attributes {stable_mosaic.version = 11 : i64} {
  func.func @_mm_act_kernel(%arg0: i32, %arg1: memref<72x512xf32, #tpu.memory_space<vmem>>, %arg2: memref<16x72xf32, #tpu.memory_space<vmem>>, %arg3: memref<16x1xf32, #tpu.memory_space<vmem>>, %arg4: memref<16x512xf32, #tpu.memory_space<vmem>>) attributes {dimension_semantics = [#tpu.dimension_semantics<parallel>], iteration_bounds = array<i64: 1>, scalar_prefetch = 0 : i64, scratch_operands = 0 : i64, tpu.core_type = #tpu.core_type<tc>, window_params = [{transform_indices = @transform_0, window_bounds = array<i64: 72, 512>}, {pipeline_mode = #tpu.pipeline_mode<synchronous>, transform_indices = @transform_1, window_bounds = array<i64: 16, 72>}, {pipeline_mode = #tpu.pipeline_mode<synchronous>, transform_indices = @transform_2, window_bounds = array<i64: 16, 1>}, {transform_indices = @transform_3, window_bounds = array<i64: 16, 512>}]} {
    %c0 = arith.constant 0 : index
    %c0_0 = arith.constant 0 : index
    %0 = vector.load %arg2[%c0, %c0_0] : memref<16x72xf32, #tpu.memory_space<vmem>>, vector<16x72xf32>
    %c0_1 = arith.constant 0 : index
    %c0_2 = arith.constant 0 : index
    %1 = vector.load %arg1[%c0_1, %c0_2] : memref<72x512xf32, #tpu.memory_space<vmem>>, vector<72x512xf32>
    %cst = arith.constant dense<0.000000e+00> : vector<16x512xf32>
    %2 = tpu.matmul %0, %1, %cst {dimension_numbers = #tpu.dot_dimension_numbers<[1], [0], [0], [1], [0, 0, 1, 1], [], []>} : vector<16x72xf32>, vector<72x512xf32>, vector<16x512xf32> -> vector<16x512xf32>
    %c0_3 = arith.constant 0 : index
    %c0_4 = arith.constant 0 : index
    %3 = vector.load %arg3[%c0_3, %c0_4] : memref<16x1xf32, #tpu.memory_space<vmem>>, vector<16x1xf32>
    %4 = vector.broadcast %3 : vector<16x1xf32> to vector<16x512xf32>
    %5 = arith.addf %2, %4 : vector<16x512xf32>
    %c0_5 = arith.constant 0 : index
    %c0_6 = arith.constant 0 : index
    %6 = vector.load %arg4[%c0_5, %c0_6] : memref<16x512xf32, #tpu.memory_space<vmem>>, vector<16x512xf32>
    tpu.vector_store %arg4[%c0_5, %c0_6], %5 {strides = array<i32>} : memref<16x512xf32, #tpu.memory_space<vmem>>, vector<16x512xf32>,
    return
  }
  func.func @transform_0(%arg0: i32) -> (i32, i32) {
    %c0_i32 = arith.constant 0 : i32
    %c0_i32_0 = arith.constant 0 : i32
    return %c0_i32, %arg0 : i32, i32
  }
  func.func @transform_1(%arg0: i32) -> (i32, i32) {
    %c0_i32 = arith.constant 0 : i32
    %c0_i32_0 = arith.constant 0 : i32
    %c0_i32_1 = arith.constant 0 : i32
    return %c0_i32, %c0_i32_0 : i32, i32
  }
  func.func @transform_2(%arg0: i32) -> (i32, i32) {
    %c0_i32 = arith.constant 0 : i32
    %c0_i32_0 = arith.constant 0 : i32
    %c0_i32_1 = arith.constant 0 : i32
    return %c0_i32, %c0_i32_0 : i32, i32
  }
  func.func @transform_3(%arg0: i32) -> (i32, i32) {
    %c0_i32 = arith.constant 0 : i32
    %c0_i32_0 = arith.constant 0 : i32
    return %c0_i32, %arg0 : i32, i32
  }
}

</mosaic_0001>

<llo_original>
// kernel: tpu_custom_call.1
$region0: #{tpu_custom_call.1}
  #allocation0 [shape = 'u32[]', space=smem, size = 0x4, offset = 0x4, fixed_abs, tag = 'smem constant byte address 0x4 - core index']
  #allocation1 [shape = 'u32[72,128]{1,0:T(1,128)}', space=vmem, size = 0x9000, scoped, tag = 'internal scratch']
  %s0 = inlined_call_operand.hbm [shape: f32[72,512], index: 0, kind: input, shape index: {}]
  %s1 = inlined_call_operand.vmem [shape: f32[16,72], index: 1, kind: input, shape index: {}]
  %s2 = inlined_call_operand.vmem [shape: f32[16,1], index: 2, kind: input, shape index: {}]
  %s3 = inlined_call_operand.hbm [shape: f32[16,512], index: 3, kind: output, shape index: {}]
  %s4 = sld [smem:[#allocation0]]
  $region26: #{tpu_custom_call.1} parent=0
    _
  %s6 = ssub.s32 1, %s4
  %s7 = scalar_select 0, %s6, %s4
  $region1: #{tpu_custom_call.1} parent=0
    #allocation2 [shape = 'u8[147456]{0}', space=vmem, size = 0x24000, scoped, tag = 'input window, operand 0, single buffered']
    #allocation3 [shape = 's32[1]{0}', space=sflag, size = 0x4, scoped, tag = 'scoped memory for tpu_custom_call.1']
    #allocation4 [shape = 's32[1]{0}', space=sflag, size = 0x4, scoped, tag = 'scoped memory for tpu_custom_call.1']
    #allocation5 [shape = 'u8[32768]{0}', space=vmem, size = 0x8000, scoped, tag = 'output window, operand 0, single buffered']
    %8 = vsyncpa [#allocation3], 0
    %9 = vsyncpa [#allocation4], 0
    // Predicated region
    $region2: #{tpu_custom_call.1} parent=1 // pred_check
      _
    $region3: #{tpu_custom_call.1} parent=1 // pred_check_branch
      %11 = sbr.rel (0) target = $region5
    $region4: #{tpu_custom_call.1} parent=1 // pred_region
      %13 = vsyncadd [#allocation3], 0
      %s14 = sshll.u32 %s0, 4
      %s15 = int_to_ptr.hbm [resolvable:$true] %s14
      %s16 = sshll.u32 [#allocation2], 4
      %s17 = int_to_ptr.vmem [resolvable:$true] %s16
      %22 = dma.hbm_to_vmem [thread:$0]  %s15, 4608, %s17, [#allocation3], 512, 512, 32
    $region5: #{tpu_custom_call.1} parent=1 // pred_fallthru
      _
    // Predicated region
    $region6: #{tpu_custom_call.1} parent=1 // pred_check
      _
    $region7: #{tpu_custom_call.1} parent=1 // pred_check_branch
      %24 = sbr.rel (0) target = $region9
    $region8: #{tpu_custom_call.1} parent=1 // pred_region
      _
    $region9: #{tpu_custom_call.1} parent=1 // pred_fallthru
      _
    // Predicated region
    $region10: #{tpu_custom_call.1} parent=1 // pred_check
      _
    $region11: #{tpu_custom_call.1} parent=1 // pred_check_branch
      %26 = sbr.rel (0) target = $region13
    $region12: #{tpu_custom_call.1} parent=1 // pred_region
      _
    $region13: #{tpu_custom_call.1} parent=1 // pred_fallthru
      _
    // Predicated region
    $region14: #{tpu_custom_call.1} parent=1 // pred_check
      _
    $region15: #{tpu_custom_call.1} parent=1 // pred_check_branch
      %28 = sbr.rel (0) target = $region17
    $region16: #{tpu_custom_call.1} parent=1 // pred_region
      %30 = dma.done [#allocation3], 4608
    $region17: #{tpu_custom_call.1} parent=1 // pred_fallthru
      _
    %v31 = vld [vmem:[%s1] sm:$0xff]
    %v32 = vld [vmem:[%s1 + $0x8] sm:$0xff]
    %v33 = vld [vmem:[#allocation2] sm:$0xff]
    %v34 = vld [vmem:[#allocation2 + $0x8] sm:$0xff]
    %v35 = vld [vmem:[#allocation2 + $0x10] sm:$0xff]
    %v36 = vld [vmem:[#allocation2 + $0x18] sm:$0xff]
    %v37 = vld [vmem:[#allocation2 + $0x20] sm:$0xff]
    %v38 = vld [vmem:[#allocation2 + $0x28] sm:$0xff]
    %v39 = vld [vmem:[#allocation2 + $0x30] sm:$0xff]
    %v40 = vld [vmem:[#allocation2 + $0x38] sm:$0xff]
    %v41 = vld [vmem:[#allocation2 + $0x40] sm:$0xff]
    %v42 = vld [vmem:[#allocation2 + $0x48] sm:$0xff]
    %v43 = vld [vmem:[#allocation2 + $0x50] sm:$0xff]
    %v44 = vld [vmem:[#allocation2 + $0x58] sm:$0xff]
    %v45 = vld [vmem:[#allocation2 + $0x60] sm:$0xff]
    %v46 = vld [vmem:[#allocation2 + $0x68] sm:$0xff]
    %v47 = vld [vmem:[#allocation2 + $0x70] sm:$0xff]
    %v48 = vld [vmem:[#allocation2 + $0x78] sm:$0xff]
    %v49 = vld [vmem:[#allocation2 + $0x80] sm:$0xff]
    %v50 = vld [vmem:[#allocation2 + $0x88] sm:$0xff]
    %v51 = vld [vmem:[#allocation2 + $0x90] sm:$0xff]
    %v52 = vld [vmem:[#allocation2 + $0x98] sm:$0xff]
    %v53 = vld [vmem:[#allocation2 + $0xa0] sm:$0xff]
    %v54 = vld [vmem:[#allocation2 + $0xa8] sm:$0xff]
    %v55 = vld [vmem:[#allocation2 + $0xb0] sm:$0xff]
    %v56 = vld [vmem:[#allocation2 + $0xb8] sm:$0xff]
    %v57 = vld [vmem:[#allocation2 + $0xc0] sm:$0xff]
    %v58 = vld [vmem:[#allocation2 + $0xc8] sm:$0xff]
    %v59 = vld [vmem:[#allocation2 + $0xd0] sm:$0xff]
    %v60 = vld [vmem:[#allocation2 + $0xd8] sm:$0xff]
    %v61 = vld [vmem:[#allocation2 + $0xe0] sm:$0xff]
    %v62 = vld [vmem:[#allocation2 + $0xe8] sm:$0xff]
    %v63 = vld [vmem:[#allocation2 + $0xf0] sm:$0xff]
    %v64 = vld [vmem:[#allocation2 + $0xf8] sm:$0xff]
    %v65 = vld [vmem:[#allocation2 + $0x100] sm:$0xff]
    %v66 = vld [vmem:[#allocation2 + $0x108] sm:$0xff]
    %v67 = vld [vmem:[#allocation2 + $0x110] sm:$0xff]
    %v68 = vld [vmem:[#allocation2 + $0x118] sm:$0xff]
    %v69 = vld [vmem:[%s2] sm:$0xff]
    %v70 = vld [vmem:[%s2 + $0x8] sm:$0xff]
    %72 = vset.pattern.permute.xlu0 0
    %73 = vperm.xlu0 %72, %v69
    %v74 = vpop.permute.xlu0 %73
    %77 = vset.pattern.permute.xlu0 0
    %78 = vperm.xlu0 %77, %v70
    %v79 = vpop.permute.xlu0 %78
    %vm81 = vcmask 588800
    %v83 = vsel %vm81, %v31, 0
    %v86 = vsel %vm81, %v32, 0
    %88 = vmatpush.msra.mxu0 0.0
    %89 = vmatpush.msra.mxu0 0.0
    %90 = vmatpush.msra.mxu0 0.0
    %91 = vmatpush.msra.mxu0 0.0
    %92 = vmatpush.msra.mxu0 0.0
    %93 = vmatpush.msra.mxu0 0.0
    %94 = vmatpush.msra.mxu0 0.0
    %95 = vmatpush.msra.mxu0 %v65
    %96 = vmatpush.msra.mxu0 %v61
    %97 = vmatpush.msra.mxu0 %v57
    %98 = vmatpush.msra.mxu0 %v53
    %99 = vmatpush.msra.mxu0 %v49
    %100 = vmatpush.msra.mxu0 %v45
    %101 = vmatpush.msra.mxu0 %v41
    %102 = vmatpush.msra.mxu0 %v37
    %103 = vmatpush.msra.mxu0 %v33
    %104 = vmatmul.f32.gmra.mxu0 %v83
    %v105 = vpop.f32.mrf.mxu0
    %v106 = vadd.f32 %v74, %v105
    %107 = vmatmul.f32.gmra.mxu0 %v86
    %v108 = vpop.f32.mrf.mxu0
    %v109 = vadd.f32 %v79, %v108
    %110 = vdwg.mxu0
    %111 = vmatpush.msra.mxu0 0.0
    %112 = vmatpush.msra.mxu0 0.0
    %113 = vmatpush.msra.mxu0 0.0
    %114 = vmatpush.msra.mxu0 0.0
    %115 = vmatpush.msra.mxu0 0.0
    %116 = vmatpush.msra.mxu0 0.0
    %117 = vmatpush.msra.mxu0 0.0
    %118 = vmatpush.msra.mxu0 %v66
    %119 = vmatpush.msra.mxu0 %v62
    %120 = vmatpush.msra.mxu0 %v58
    %121 = vmatpush.msra.mxu0 %v54
    %122 = vmatpush.msra.mxu0 %v50
    %123 = vmatpush.msra.mxu0 %v46
    %124 = vmatpush.msra.mxu0 %v42
    %125 = vmatpush.msra.mxu0 %v38
    %126 = vmatpush.msra.mxu0 %v34
    %127 = vmatmul.f32.gmra.mxu0 %v83
    %v128 = vpop.f32.mrf.mxu0
    %v129 = vadd.f32 %v74, %v128
    %130 = vmatmul.f32.gmra.mxu0 %v86
    %v131 = vpop.f32.mrf.mxu0
    %v132 = vadd.f32 %v79, %v131
    %133 = vdwg.mxu0
    %134 = vmatpush.msra.mxu0 0.0
    %135 = vmatpush.msra.mxu0 0.0
    %136 = vmatpush.msra.mxu0 0.0
    %137 = vmatpush.msra.mxu0 0.0
    %138 = vmatpush.msra.mxu0 0.0
    %139 = vmatpush.msra.mxu0 0.0
    %140 = vmatpush.msra.mxu0 0.0
    %141 = vmatpush.msra.mxu0 %v67
    %142 = vmatpush.msra.mxu0 %v63
    %143 = vmatpush.msra.mxu0 %v59
    %144 = vmatpush.msra.mxu0 %v55
    %145 = vmatpush.msra.mxu0 %v51
    %146 = vmatpush.msra.mxu0 %v47
    %147 = vmatpush.msra.mxu0 %v43
    %148 = vmatpush.msra.mxu0 %v39
    %149 = vmatpush.msra.mxu0 %v35
    %150 = vmatmul.f32.gmra.mxu0 %v83
    %v151 = vpop.f32.mrf.mxu0
    %v152 = vadd.f32 %v74, %v151
    %153 = vmatmul.f32.gmra.mxu0 %v86
    %v154 = vpop.f32.mrf.mxu0
    %v155 = vadd.f32 %v79, %v154
    %156 = vdwg.mxu0
    %157 = vmatpush.msra.mxu0 0.0
    %158 = vmatpush.msra.mxu0 0.0
    %159 = vmatpush.msra.mxu0 0.0
    %160 = vmatpush.msra.mxu0 0.0
    %161 = vmatpush.msra.mxu0 0.0
    %162 = vmatpush.msra.mxu0 0.0
    %163 = vmatpush.msra.mxu0 0.0
    %164 = vmatpush.msra.mxu0 %v68
    %165 = vmatpush.msra.mxu0 %v64
    %166 = vmatpush.msra.mxu0 %v60
    %167 = vmatpush.msra.mxu0 %v56
    %168 = vmatpush.msra.mxu0 %v52
    %169 = vmatpush.msra.mxu0 %v48
    %170 = vmatpush.msra.mxu0 %v44
    %171 = vmatpush.msra.mxu0 %v40
    %172 = vmatpush.msra.mxu0 %v36
    %173 = vmatmul.f32.gmra.mxu0 %v83
    %v174 = vpop.f32.mrf.mxu0
    %v175 = vadd.f32 %v74, %v174
    %176 = vmatmul.f32.gmra.mxu0 %v86
    %v177 = vpop.f32.mrf.mxu0
    %v178 = vadd.f32 %v79, %v177
    %179 = vdwg.mxu0
    %180 = vst [vmem:[#allocation5] sm:$0xff] %v106
    %181 = vst [vmem:[#allocation5 + $0x8] sm:$0xff] %v129
    %182 = vst [vmem:[#allocation5 + $0x10] sm:$0xff] %v152
    %183 = vst [vmem:[#allocation5 + $0x18] sm:$0xff] %v175
    %184 = vst [vmem:[#allocation5 + $0x20] sm:$0xff] %v109
    %185 = vst [vmem:[#allocation5 + $0x28] sm:$0xff] %v132
    %186 = vst [vmem:[#allocation5 + $0x30] sm:$0xff] %v155
    %187 = vst [vmem:[#allocation5 + $0x38] sm:$0xff] %v178
    // Predicated region
    $region18: #{tpu_custom_call.1} parent=1 // pred_check
      _
    $region19: #{tpu_custom_call.1} parent=1 // pred_check_branch
      %189 = sbr.rel (0) target = $region21
    $region20: #{tpu_custom_call.1} parent=1 // pred_region
      %191 = vsyncadd [#allocation4], 0
      %s192 = sshll.u32 [#allocation5], 4
      %s193 = int_to_ptr.vmem [resolvable:$true] %s192
      %s194 = sshll.u32 %s3, 4
      %s195 = int_to_ptr.hbm [resolvable:$true] %s194
      %200 = dma.vmem_to_hbm [thread:$0]  %s193, 1024, %s195, [#allocation4], 512, 512, 32
    $region21: #{tpu_custom_call.1} parent=1 // pred_fallthru
      _
    // Predicated region
    $region22: #{tpu_custom_call.1} parent=1 // pred_check
      _
    $region23: #{tpu_custom_call.1} parent=1 // pred_check_branch
      %202 = sbr.rel (0) target = $region25
    $region24: #{tpu_custom_call.1} parent=1 // pred_region
      %204 = dma.done [#allocation4], 1024
    $region25: #{tpu_custom_call.1} parent=1 // pred_fallthru
      _
    %205 = vsyncpa [#allocation3], 1
    %206 = vsyncpa [#allocation4], 1

</llo_original>
